<compile_context>
chip_gen: v7x
topology: tpu7x:2x2x1
jax: 0.10.0
libtpu: 0.0.40
codegen_flags: <defaults>
</compile_context>

<pallas_src>
import functools

import jax
import jax.numpy as jnp
from jax.experimental import pallas as pl
from jax.experimental.pallas import tpu as pltpu


def _affine_coupling_kernel(mm_dtype,
                            x1_ref, x2_ref, cond_ref,
                            w1x_ref, w1c_ref, b1_ref,
                            w2_ref, b2_ref,
                            w3s_ref, b3s_ref,
                            w3t_ref, b3t_ref,
                            escale_ref,
                            y2_ref, logdet_ref):
    x1 = x1_ref[...].astype(mm_dtype)                  # [TB, d1]
    cond = cond_ref[...].astype(mm_dtype)              # [TB, cond_dim]

    # net: Linear -> ReLU -> Linear -> ReLU -> Linear   (w1 split by rows, w3 by cols)
    h1 = (jnp.dot(x1, w1x_ref[...].astype(mm_dtype),
                  preferred_element_type=jnp.float32)
          + jnp.dot(cond, w1c_ref[...].astype(mm_dtype),
                    preferred_element_type=jnp.float32)
          + b1_ref[...])
    h1 = jnp.maximum(h1, 0.0).astype(mm_dtype)

    h2 = jnp.dot(h1, w2_ref[...].astype(mm_dtype),
                 preferred_element_type=jnp.float32) + b2_ref[...]
    h2 = jnp.maximum(h2, 0.0).astype(mm_dtype)

    s = jnp.dot(h2, w3s_ref[...].astype(mm_dtype),
                preferred_element_type=jnp.float32) + b3s_ref[...]
    t = jnp.dot(h2, w3t_ref[...].astype(mm_dtype),
                preferred_element_type=jnp.float32) + b3t_ref[...]

    s = jnp.tanh(s) * escale_ref[0]                    # exp(scale) precomputed (SMEM)
    es = jnp.exp(s)                                    # single EUP exp per element

    y2_ref[...] = (x2_ref[...] * es + t).astype(y2_ref.dtype)
    logdet_ref[...] = jnp.sum(s, axis=-1, keepdims=True)


def _pick_batch_tile(B, d1, d2, cond_dim, hidden, bytes_budget=8 << 20):
    """Batch tile sized against a conservative VMEM budget (fits v7x's 64 MiB)."""
    # double-buffered activation tiles (in + out) + two [TB, hidden] intermediates, f32
    per_row_bytes = 4 * (2 * (d1 + d2 + cond_dim) + 2 * (d2 + 1) + 2 * hidden)
    tb = max(8, bytes_budget // max(per_row_bytes, 1))
    tb = min(tb, 1024)
    if tb >= B:
        return B                                        # single tile, full batch
    return max(8, (tb // 8) * 8)                        # f32 sublane multiple


def affine_coupling_forward(x, cond, params, *, block_b=None,
                            matmul_dtype=jnp.float32):
    """params = dict(w1, b1, w2, b2, w3, b3, scale). Returns (y, logdet)."""
    B, dim = x.shape
    d1 = dim // 2
    d2 = dim - d1
    cond_dim = cond.shape[-1]
    hidden = params["w1"].shape[-1]

    x1 = x[:, :d1]
    x2 = x[:, d1:]

    # Split parameters in the wrapper so the kernel never does unaligned lane slices.
    w1 = params["w1"]
    w1x, w1c = w1[:d1], w1[d1:]
    b1 = params["b1"].reshape(1, -1)
    w2 = params["w2"]
    b2 = params["b2"].reshape(1, -1)
    w3 = params["w3"]
    w3s, w3t = w3[:, :d2], w3[:, d2:]
    b3 = params["b3"]
    b3s, b3t = b3[:d2].reshape(1, -1), b3[d2:].reshape(1, -1)
    escale = jnp.exp(params["scale"]).reshape(1).astype(jnp.float32)

    TB = block_b if block_b is not None else _pick_batch_tile(B, d1, d2, cond_dim, hidden)
    grid = (pl.cdiv(B, TB),)

    def batch_spec(feat):
        return pl.BlockSpec((TB, feat), lambda i: (i, 0))

    def resident_spec(shape):
        return pl.BlockSpec(shape, lambda i: (0, 0))

    smem_spec = pl.BlockSpec(memory_space=pltpu.MemorySpace.SMEM)

    kernel = functools.partial(_affine_coupling_kernel, matmul_dtype)

    y2, logdet = pl.pallas_call(
        kernel,
        grid=grid,
        out_shape=(
            jax.ShapeDtypeStruct((B, d2), x.dtype),
            jax.ShapeDtypeStruct((B, 1), jnp.float32),
        ),
        in_specs=[
            batch_spec(d1),                     # x1
            batch_spec(d2),                     # x2
            batch_spec(cond_dim),               # cond
            resident_spec(w1x.shape),           # w1 (x1 rows)
            resident_spec(w1c.shape),           # w1 (cond rows)
            resident_spec(b1.shape),            # b1
            resident_spec(w2.shape),            # w2
            resident_spec(b2.shape),            # b2
            resident_spec(w3s.shape),           # w3 (s half)
            resident_spec(b3s.shape),           # b3 (s half)
            resident_spec(w3t.shape),           # w3 (t half)
            resident_spec(b3t.shape),           # b3 (t half)
            smem_spec,                          # exp(scale) scalar
        ],
        out_specs=(
            batch_spec(d2),                     # y2 (lane-dense output)
            batch_spec(1),                      # logdet
        ),
        compiler_params=pltpu.CompilerParams(
            dimension_semantics=("parallel",),
        ),
    )(x1, x2, cond, w1x, w1c, b1, w2, b2, w3s, b3s, w3t, b3t, escale)

    # Final concat of the untouched x1 half happens outside the kernel (no unaligned
    # masked stores and no pointless HBM round-trip of x1 through the kernel).
    y = jnp.concatenate([x1, y2], axis=-1)
    return y, logdet[:, 0]


def init_params(key, dim, cond_dim, hidden):
    """Deterministic init matching the nn.Linear shapes of the PyTorch module."""
    d_in = dim // 2 + cond_dim
    d_out = (dim - dim // 2) * 2
    ks = jax.random.split(key, 6)

    def linear_init(kw, kb, fan_in, fan_out):
        bound = 1.0 / jnp.sqrt(fan_in)
        w = jax.random.uniform(kw, (fan_in, fan_out), jnp.float32, -bound, bound)
        b = jax.random.uniform(kb, (fan_out,), jnp.float32, -bound, bound)
        return w, b

    w1, b1 = linear_init(ks[0], ks[1], d_in, hidden)
    w2, b2 = linear_init(ks[2], ks[3], hidden, hidden)
    w3, b3 = linear_init(ks[4], ks[5], hidden, d_out)
    scale = jnp.zeros((1,), jnp.float32)                # nn.Parameter(torch.zeros(1))
    return dict(w1=w1, b1=b1, w2=w2, b2=b2, w3=w3, b3=b3, scale=scale)


def reference_forward(x, cond, params):
    """Pure-JAX reference mirroring the PyTorch forward (for correctness check)."""
    dim = x.shape[-1]
    d1 = dim // 2
    x1, x2 = x[:, :d1], x[:, d1:]
    h = jnp.concatenate([x1, cond], -1)
    h = jax.nn.relu(h @ params["w1"] + params["b1"])
    h = jax.nn.relu(h @ params["w2"] + params["b2"])
    st = h @ params["w3"] + params["b3"]
    d2 = dim - d1
    s, t = st[:, :d2], st[:, d2:]
    s = jnp.tanh(s) * jnp.exp(params["scale"][0])
    y2 = x2 * jnp.exp(s) + t
    return jnp.concatenate([x1, y2], -1), s.sum(-1)


if __name__ == "__main__":
    dim, cond_dim, hidden = 8, 8, 32
    key = jax.random.PRNGKey(0)
    k_x, k_c, k_p = jax.random.split(key, 3)
    params = init_params(k_p, dim, cond_dim, hidden)

    # Case 1: small batch, single grid step.
    B = 8
    x = jax.random.normal(k_x, (B, dim), jnp.float32)
    cond = jax.random.normal(k_c, (B, cond_dim), jnp.float32)
    y, logdet = affine_coupling_forward(x, cond, params)
    jax.block_until_ready((y, logdet))
    y_ref, logdet_ref = reference_forward(x, cond, params)
    assert jnp.allclose(y, y_ref, atol=1e-5, rtol=1e-5)
    assert jnp.allclose(logdet, logdet_ref, atol=1e-5, rtol=1e-5)

    # Case 2: larger batch with an explicit tile -> multi-step pipelined grid.
    B2 = 32
    x2_in = jax.random.normal(jax.random.PRNGKey(1), (B2, dim), jnp.float32)
    cond2 = jax.random.normal(jax.random.PRNGKey(2), (B2, cond_dim), jnp.float32)
    y2_out, logdet2 = affine_coupling_forward(x2_in, cond2, params, block_b=8)
    jax.block_until_ready((y2_out, logdet2))
    y2_ref, logdet2_ref = reference_forward(x2_in, cond2, params)
    assert jnp.allclose(y2_out, y2_ref, atol=1e-5, rtol=1e-5)
    assert jnp.allclose(logdet2, logdet2_ref, atol=1e-5, rtol=1e-5)

    print("KERNEL_OK")
</pallas_src>

<mosaic_0001>
module attributes {stable_mosaic.version = 11 : i64} {
  func.func @_affine_coupling_kernel(%arg0: i32, %arg1: memref<8x4xf32, #tpu.memory_space<vmem>>, %arg2: memref<8x4xf32, #tpu.memory_space<vmem>>, %arg3: memref<8x8xf32, #tpu.memory_space<vmem>>, %arg4: memref<4x32xf32, #tpu.memory_space<vmem>>, %arg5: memref<8x32xf32, #tpu.memory_space<vmem>>, %arg6: memref<1x32xf32, #tpu.memory_space<vmem>>, %arg7: memref<32x32xf32, #tpu.memory_space<vmem>>, %arg8: memref<1x32xf32, #tpu.memory_space<vmem>>, %arg9: memref<32x4xf32, #tpu.memory_space<vmem>>, %arg10: memref<1x4xf32, #tpu.memory_space<vmem>>, %arg11: memref<32x4xf32, #tpu.memory_space<vmem>>, %arg12: memref<1x4xf32, #tpu.memory_space<vmem>>, %arg13: memref<1xf32, #tpu.memory_space<smem>>, %arg14: memref<8x4xf32, #tpu.memory_space<vmem>>, %arg15: memref<8x1xf32, #tpu.memory_space<vmem>>) attributes {dimension_semantics = [#tpu.dimension_semantics<parallel>], iteration_bounds = array<i64: 1>, scalar_prefetch = 0 : i64, scratch_operands = 0 : i64, tpu.core_type = #tpu.core_type<tc>, window_params = [{transform_indices = @transform_0, window_bounds = array<i64: 8, 4>}, {transform_indices = @transform_1, window_bounds = array<i64: 8, 4>}, {transform_indices = @transform_2, window_bounds = array<i64: 8, 8>}, {pipeline_mode = #tpu.pipeline_mode<synchronous>, transform_indices = @transform_3, window_bounds = array<i64: 4, 32>}, {pipeline_mode = #tpu.pipeline_mode<synchronous>, transform_indices = @transform_4, window_bounds = array<i64: 8, 32>}, {pipeline_mode = #tpu.pipeline_mode<synchronous>, transform_indices = @transform_5, window_bounds = array<i64: 1, 32>}, {pipeline_mode = #tpu.pipeline_mode<synchronous>, transform_indices = @transform_6, window_bounds = array<i64: 32, 32>}, {pipeline_mode = #tpu.pipeline_mode<synchronous>, transform_indices = @transform_7, window_bounds = array<i64: 1, 32>}, {pipeline_mode = #tpu.pipeline_mode<synchronous>, transform_indices = @transform_8, window_bounds = array<i64: 32, 4>}, {pipeline_mode = #tpu.pipeline_mode<synchronous>, transform_indices = @transform_9, window_bounds = array<i64: 1, 4>}, {pipeline_mode = #tpu.pipeline_mode<synchronous>, transform_indices = @transform_10, window_bounds = array<i64: 32, 4>}, {pipeline_mode = #tpu.pipeline_mode<synchronous>, transform_indices = @transform_11, window_bounds = array<i64: 1, 4>}, {transform_indices = @transform_12, window_bounds = array<i64: 1>}, {transform_indices = @transform_13, window_bounds = array<i64: 8, 4>}, {transform_indices = @transform_14, window_bounds = array<i64: 8, 1>}]} {
    %c0 = arith.constant 0 : index
    %c0_0 = arith.constant 0 : index
    %0 = vector.load %arg1[%c0, %c0_0] : memref<8x4xf32, #tpu.memory_space<vmem>>, vector<8x4xf32>
    %c0_1 = arith.constant 0 : index
    %c0_2 = arith.constant 0 : index
    %1 = vector.load %arg3[%c0_1, %c0_2] : memref<8x8xf32, #tpu.memory_space<vmem>>, vector<8x8xf32>
    %c0_3 = arith.constant 0 : index
    %c0_4 = arith.constant 0 : index
    %2 = vector.load %arg4[%c0_3, %c0_4] : memref<4x32xf32, #tpu.memory_space<vmem>>, vector<4x32xf32>
    %cst = arith.constant dense<0.000000e+00> : vector<8x32xf32>
    %3 = tpu.matmul %0, %2, %cst {dimension_numbers = #tpu.dot_dimension_numbers<[1], [0], [0], [1], [0, 0, 1, 1], [], []>} : vector<8x4xf32>, vector<4x32xf32>, vector<8x32xf32> -> vector<8x32xf32>
    %c0_5 = arith.constant 0 : index
    %c0_6 = arith.constant 0 : index
    %4 = vector.load %arg5[%c0_5, %c0_6] : memref<8x32xf32, #tpu.memory_space<vmem>>, vector<8x32xf32>
    %cst_7 = arith.constant dense<0.000000e+00> : vector<8x32xf32>
    %5 = tpu.matmul %1, %4, %cst_7 {dimension_numbers = #tpu.dot_dimension_numbers<[1], [0], [0], [1], [0, 0, 1, 1], [], []>} : vector<8x8xf32>, vector<8x32xf32>, vector<8x32xf32> -> vector<8x32xf32>
    %6 = arith.addf %3, %5 : vector<8x32xf32>
    %c0_8 = arith.constant 0 : index
    %c0_9 = arith.constant 0 : index
    %7 = vector.load %arg6[%c0_8, %c0_9] : memref<1x32xf32, #tpu.memory_space<vmem>>, vector<1x32xf32>
    %8 = vector.broadcast %7 : vector<1x32xf32> to vector<8x32xf32>
    %9 = arith.addf %6, %8 : vector<8x32xf32>
    %cst_10 = arith.constant 0.000000e+00 : f32
    %10 = vector.broadcast %cst_10 : f32 to vector<8x32xf32>
    %11 = arith.maximumf %9, %10 : vector<8x32xf32>
    %c0_11 = arith.constant 0 : index
    %c0_12 = arith.constant 0 : index
    %12 = vector.load %arg7[%c0_11, %c0_12] : memref<32x32xf32, #tpu.memory_space<vmem>>, vector<32x32xf32>
    %cst_13 = arith.constant dense<0.000000e+00> : vector<8x32xf32>
    %13 = tpu.matmul %11, %12, %cst_13 {dimension_numbers = #tpu.dot_dimension_numbers<[1], [0], [0], [1], [0, 0, 1, 1], [], []>} : vector<8x32xf32>, vector<32x32xf32>, vector<8x32xf32> -> vector<8x32xf32>
    %c0_14 = arith.constant 0 : index
    %c0_15 = arith.constant 0 : index
    %14 = vector.load %arg8[%c0_14, %c0_15] : memref<1x32xf32, #tpu.memory_space<vmem>>, vector<1x32xf32>
    %15 = vector.broadcast %14 : vector<1x32xf32> to vector<8x32xf32>
    %16 = arith.addf %13, %15 : vector<8x32xf32>
    %cst_16 = arith.constant 0.000000e+00 : f32
    %17 = vector.broadcast %cst_16 : f32 to vector<8x32xf32>
    %18 = arith.maximumf %16, %17 : vector<8x32xf32>
    %c0_17 = arith.constant 0 : index
    %c0_18 = arith.constant 0 : index
    %19 = vector.load %arg9[%c0_17, %c0_18] : memref<32x4xf32, #tpu.memory_space<vmem>>, vector<32x4xf32>
    %cst_19 = arith.constant dense<0.000000e+00> : vector<8x4xf32>
    %20 = tpu.matmul %18, %19, %cst_19 {dimension_numbers = #tpu.dot_dimension_numbers<[1], [0], [0], [1], [0, 0, 1, 1], [], []>} : vector<8x32xf32>, vector<32x4xf32>, vector<8x4xf32> -> vector<8x4xf32>
    %c0_20 = arith.constant 0 : index
    %c0_21 = arith.constant 0 : index
    %21 = vector.load %arg10[%c0_20, %c0_21] : memref<1x4xf32, #tpu.memory_space<vmem>>, vector<1x4xf32>
    %22 = vector.broadcast %21 : vector<1x4xf32> to vector<8x4xf32>
    %23 = arith.addf %20, %22 : vector<8x4xf32>
    %c0_22 = arith.constant 0 : index
    %c0_23 = arith.constant 0 : index
    %24 = vector.load %arg11[%c0_22, %c0_23] : memref<32x4xf32, #tpu.memory_space<vmem>>, vector<32x4xf32>
    %cst_24 = arith.constant dense<0.000000e+00> : vector<8x4xf32>
    %25 = tpu.matmul %18, %24, %cst_24 {dimension_numbers = #tpu.dot_dimension_numbers<[1], [0], [0], [1], [0, 0, 1, 1], [], []>} : vector<8x32xf32>, vector<32x4xf32>, vector<8x4xf32> -> vector<8x4xf32>
    %c0_25 = arith.constant 0 : index
    %c0_26 = arith.constant 0 : index
    %26 = vector.load %arg12[%c0_25, %c0_26] : memref<1x4xf32, #tpu.memory_space<vmem>>, vector<1x4xf32>
    %27 = vector.broadcast %26 : vector<1x4xf32> to vector<8x4xf32>
    %28 = arith.addf %25, %27 : vector<8x4xf32>
    %29 = math.tanh %23 : vector<8x4xf32>
    %c0_27 = arith.constant 0 : index
    %30 = memref.load %arg13[%c0_27] : memref<1xf32, #tpu.memory_space<smem>>
    %31 = vector.broadcast %30 : f32 to vector<8x4xf32>
    %32 = arith.mulf %29, %31 : vector<8x4xf32>
    %33 = math.exp %32 : vector<8x4xf32>
    %c0_28 = arith.constant 0 : index
    %c0_29 = arith.constant 0 : index
    %34 = vector.load %arg2[%c0_28, %c0_29] : memref<8x4xf32, #tpu.memory_space<vmem>>, vector<8x4xf32>
    %35 = arith.mulf %34, %33 : vector<8x4xf32>
    %36 = arith.addf %35, %28 : vector<8x4xf32>
    %c0_30 = arith.constant 0 : index
    %c0_31 = arith.constant 0 : index
    %37 = vector.load %arg14[%c0_30, %c0_31] : memref<8x4xf32, #tpu.memory_space<vmem>>, vector<8x4xf32>
    tpu.vector_store %arg14[%c0_30, %c0_31], %36 {strides = array<i32>} : memref<8x4xf32, #tpu.memory_space<vmem>>, vector<8x4xf32>,
    %cst_32 = arith.constant dense<0.000000e+00> : vector<8xf32>
    %38 = vector.multi_reduction <add>, %32, %cst_32 [1] : vector<8x4xf32> to vector<8xf32>
    %39 = vector.shape_cast %38 : vector<8xf32> to vector<8x1xf32>
    %c0_33 = arith.constant 0 : index
    %c0_34 = arith.constant 0 : index
    %40 = vector.load %arg15[%c0_33, %c0_34] : memref<8x1xf32, #tpu.memory_space<vmem>>, vector<8x1xf32>
    tpu.vector_store %arg15[%c0_33, %c0_34], %39 {strides = array<i32>} : memref<8x1xf32, #tpu.memory_space<vmem>>, vector<8x1xf32>,
    return
  }
  func.func @transform_0(%arg0: i32) -> (i32, i32) {
    %c0_i32 = arith.constant 0 : i32
    %c0_i32_0 = arith.constant 0 : i32
    return %arg0, %c0_i32 : i32, i32
  }
  func.func @transform_1(%arg0: i32) -> (i32, i32) {
    %c0_i32 = arith.constant 0 : i32
    %c0_i32_0 = arith.constant 0 : i32
    return %arg0, %c0_i32 : i32, i32
  }
  func.func @transform_2(%arg0: i32) -> (i32, i32) {
    %c0_i32 = arith.constant 0 : i32
    %c0_i32_0 = arith.constant 0 : i32
    return %arg0, %c0_i32 : i32, i32
  }
  func.func @transform_3(%arg0: i32) -> (i32, i32) {
    %c0_i32 = arith.constant 0 : i32
    %c0_i32_0 = arith.constant 0 : i32
    %c0_i32_1 = arith.constant 0 : i32
    return %c0_i32, %c0_i32_0 : i32, i32
  }
  func.func @transform_4(%arg0: i32) -> (i32, i32) {
    %c0_i32 = arith.constant 0 : i32
    %c0_i32_0 = arith.constant 0 : i32
    %c0_i32_1 = arith.constant 0 : i32
    return %c0_i32, %c0_i32_0 : i32, i32
  }
  func.func @transform_5(%arg0: i32) -> (i32, i32) {
    %c0_i32 = arith.constant 0 : i32
    %c0_i32_0 = arith.constant 0 : i32
    %c0_i32_1 = arith.constant 0 : i32
    return %c0_i32, %c0_i32_0 : i32, i32
  }
  func.func @transform_6(%arg0: i32) -> (i32, i32) {
    %c0_i32 = arith.constant 0 : i32
    %c0_i32_0 = arith.constant 0 : i32
    %c0_i32_1 = arith.constant 0 : i32
    return %c0_i32, %c0_i32_0 : i32, i32
  }
  func.func @transform_7(%arg0: i32) -> (i32, i32) {
    %c0_i32 = arith.constant 0 : i32
    %c0_i32_0 = arith.constant 0 : i32
    %c0_i32_1 = arith.constant 0 : i32
    return %c0_i32, %c0_i32_0 : i32, i32
  }
  func.func @transform_8(%arg0: i32) -> (i32, i32) {
    %c0_i32 = arith.constant 0 : i32
    %c0_i32_0 = arith.constant 0 : i32
    %c0_i32_1 = arith.constant 0 : i32
    return %c0_i32, %c0_i32_0 : i32, i32
  }
  func.func @transform_9(%arg0: i32) -> (i32, i32) {
    %c0_i32 = arith.constant 0 : i32
    %c0_i32_0 = arith.constant 0 : i32
    %c0_i32_1 = arith.constant 0 : i32
    return %c0_i32, %c0_i32_0 : i32, i32
  }
  func.func @transform_10(%arg0: i32) -> (i32, i32) {
    %c0_i32 = arith.constant 0 : i32
    %c0_i32_0 = arith.constant 0 : i32
    %c0_i32_1 = arith.constant 0 : i32
    return %c0_i32, %c0_i32_0 : i32, i32
  }
  func.func @transform_11(%arg0: i32) -> (i32, i32) {
    %c0_i32 = arith.constant 0 : i32
    %c0_i32_0 = arith.constant 0 : i32
    %c0_i32_1 = arith.constant 0 : i32
    return %c0_i32, %c0_i32_0 : i32, i32
  }
  func.func @transform_12(%arg0: i32) -> i32 {
    %c0_i32 = arith.constant 0 : i32
    %c0_i32_0 = arith.constant 0 : i32
    return %c0_i32 : i32
  }
  func.func @transform_13(%arg0: i32) -> (i32, i32) {
    %c0_i32 = arith.constant 0 : i32
    %c0_i32_0 = arith.constant 0 : i32
    return %arg0, %c0_i32 : i32, i32
  }
  func.func @transform_14(%arg0: i32) -> (i32, i32) {
    %c0_i32 = arith.constant 0 : i32
    %c0_i32_0 = arith.constant 0 : i32
    return %arg0, %c0_i32 : i32, i32
  }
}

</mosaic_0001>

<llo_original>
// kernel: tpu_custom_call.1
$region0: #{tpu_custom_call.1}
  #allocation0 [shape = 'u32[]', space=smem, size = 0x4, offset = 0x4, fixed_abs, tag = 'smem constant byte address 0x4 - core index']
  #allocation1 [shape = 'u32[144,128]{1,0:T(1,128)}', space=vmem, size = 0x12000, scoped, tag = 'internal scratch']
  #allocation2 [shape = 'f32[1]{0:T(128)S(6)}', space=smem, size = 0x200, scoped, tag = 'scoped memory for tpu_custom_call.1']
  %s0 = inlined_call_operand.vmem [shape: f32[8,4], index: 0, kind: input, shape index: {}]
  %s1 = inlined_call_operand.vmem [shape: f32[8,4], index: 1, kind: input, shape index: {}]
  %s2 = inlined_call_operand.vmem [shape: f32[8,8], index: 2, kind: input, shape index: {}]
  %s3 = inlined_call_operand.vmem [shape: f32[4,32], index: 3, kind: input, shape index: {}]
  %s4 = inlined_call_operand.vmem [shape: f32[8,32], index: 4, kind: input, shape index: {}]
  %s5 = inlined_call_operand.vmem [shape: f32[1,32], index: 5, kind: input, shape index: {}]
  %s6 = inlined_call_operand.vmem [shape: f32[32,32], index: 6, kind: input, shape index: {}]
  %s7 = inlined_call_operand.vmem [shape: f32[1,32], index: 7, kind: input, shape index: {}]
  %s8 = inlined_call_operand.vmem [shape: f32[32,4], index: 8, kind: input, shape index: {}]
  %s9 = inlined_call_operand.vmem [shape: f32[1,4], index: 9, kind: input, shape index: {}]
  %s10 = inlined_call_operand.vmem [shape: f32[32,4], index: 10, kind: input, shape index: {}]
  %s11 = inlined_call_operand.vmem [shape: f32[1,4], index: 11, kind: input, shape index: {}]
  %s12 = inlined_call_operand.<no memory space> [shape: f32[1], index: 12, kind: input, shape index: {}]
  %s13 = inlined_call_operand.vmem [shape: f32[8,4], index: 13, kind: output, shape index: {0}]
  %s14 = inlined_call_operand.vmem [shape: f32[8,1], index: 14, kind: output, shape index: {1}]
  %15 = xla_tuple %s13, %s14
  %s16 = sld [smem:[#allocation0]]
  $region70: #{tpu_custom_call.1} parent=0
    _
  %s18 = ssub.s32 1, %s16
  %s19 = scalar_select 0, %s18, %s16
  %20 = sst [smem:[#allocation2]] %s12
  // Predicated region
  $region2: #{tpu_custom_call.1} parent=0 // pred_check
    _
  $region3: #{tpu_custom_call.1} parent=0 // pred_check_branch
    %22 = sbr.rel (0) target = $region5
  $region4: #{tpu_custom_call.1} parent=0 // pred_region
    _
  $region5: #{tpu_custom_call.1} parent=0 // pred_fallthru
    _
  // Predicated region
  $region6: #{tpu_custom_call.1} parent=0 // pred_check
    _
  $region7: #{tpu_custom_call.1} parent=0 // pred_check_branch
    %24 = sbr.rel (0) target = $region9
  $region8: #{tpu_custom_call.1} parent=0 // pred_region
    _
  $region9: #{tpu_custom_call.1} parent=0 // pred_fallthru
    _
  // Predicated region
  $region10: #{tpu_custom_call.1} parent=0 // pred_check
    _
  $region11: #{tpu_custom_call.1} parent=0 // pred_check_branch
    %26 = sbr.rel (0) target = $region13
  $region12: #{tpu_custom_call.1} parent=0 // pred_region
    _
  $region13: #{tpu_custom_call.1} parent=0 // pred_fallthru
    _
  // Predicated region
  $region14: #{tpu_custom_call.1} parent=0 // pred_check
    _
  $region15: #{tpu_custom_call.1} parent=0 // pred_check_branch
    %28 = sbr.rel (0) target = $region17
  $region16: #{tpu_custom_call.1} parent=0 // pred_region
    _
  $region17: #{tpu_custom_call.1} parent=0 // pred_fallthru
    _
  // Predicated region
  $region18: #{tpu_custom_call.1} parent=0 // pred_check
    _
  $region19: #{tpu_custom_call.1} parent=0 // pred_check_branch
    %30 = sbr.rel (0) target = $region21
  $region20: #{tpu_custom_call.1} parent=0 // pred_region
    _
  $region21: #{tpu_custom_call.1} parent=0 // pred_fallthru
    _
  // Predicated region
  $region22: #{tpu_custom_call.1} parent=0 // pred_check
    _
  $region23: #{tpu_custom_call.1} parent=0 // pred_check_branch
    %32 = sbr.rel (0) target = $region25
  $region24: #{tpu_custom_call.1} parent=0 // pred_region
    _
  $region25: #{tpu_custom_call.1} parent=0 // pred_fallthru
    _
  // Predicated region
  $region26: #{tpu_custom_call.1} parent=0 // pred_check
    _
  $region27: #{tpu_custom_call.1} parent=0 // pred_check_branch
    %34 = sbr.rel (0) target = $region29
  $region28: #{tpu_custom_call.1} parent=0 // pred_region
    _
  $region29: #{tpu_custom_call.1} parent=0 // pred_fallthru
    _
  // Predicated region
  $region30: #{tpu_custom_call.1} parent=0 // pred_check
    _
  $region31: #{tpu_custom_call.1} parent=0 // pred_check_branch
    %36 = sbr.rel (0) target = $region33
  $region32: #{tpu_custom_call.1} parent=0 // pred_region
    _
  $region33: #{tpu_custom_call.1} parent=0 // pred_fallthru
    _
  // Predicated region
  $region34: #{tpu_custom_call.1} parent=0 // pred_check
    _
  $region35: #{tpu_custom_call.1} parent=0 // pred_check_branch
    %38 = sbr.rel (0) target = $region37
  $region36: #{tpu_custom_call.1} parent=0 // pred_region
    _
  $region37: #{tpu_custom_call.1} parent=0 // pred_fallthru
    _
  // Predicated region
  $region38: #{tpu_custom_call.1} parent=0 // pred_check
    _
  $region39: #{tpu_custom_call.1} parent=0 // pred_check_branch
    %40 = sbr.rel (0) target = $region41
  $region40: #{tpu_custom_call.1} parent=0 // pred_region
    _
  $region41: #{tpu_custom_call.1} parent=0 // pred_fallthru
    _
  // Predicated region
  $region42: #{tpu_custom_call.1} parent=0 // pred_check
    _
  $region43: #{tpu_custom_call.1} parent=0 // pred_check_branch
    %42 = sbr.rel (0) target = $region45
  $region44: #{tpu_custom_call.1} parent=0 // pred_region
    _
  $region45: #{tpu_custom_call.1} parent=0 // pred_fallthru
    _
  // Predicated region
  $region46: #{tpu_custom_call.1} parent=0 // pred_check
    _
  $region47: #{tpu_custom_call.1} parent=0 // pred_check_branch
    %44 = sbr.rel (0) target = $region49
  $region48: #{tpu_custom_call.1} parent=0 // pred_region
    _
  $region49: #{tpu_custom_call.1} parent=0 // pred_fallthru
    _
  // Predicated region
  $region50: #{tpu_custom_call.1} parent=0 // pred_check
    _
  $region51: #{tpu_custom_call.1} parent=0 // pred_check_branch
    %46 = sbr.rel (0) target = $region53
  $region52: #{tpu_custom_call.1} parent=0 // pred_region
    _
  $region53: #{tpu_custom_call.1} parent=0 // pred_fallthru
    _
  %v47 = vld [vmem:[%s0] sm:$0xff]
  %v48 = vld [vmem:[%s2] sm:$0xff]
  %v49 = vld [vmem:[%s3] sm:$0xf]
  %v50 = vld [vmem:[%s4] sm:$0xff]
  %vm51 = vcmask 64512
  %v53 = vsel %vm51, %v48, 0
  %55 = vmatprep.subr.mxu0 0.0
  %56 = vmatpush1.msra.mxu0 %v50
  %57 = vmatprep.subr.mxu0 0.0
  %58 = vmatpush1.msra.mxu0 0.0
  %59 = vmatprep.subr.mxu0 0.0
  %60 = vmatpush1.msra.mxu0 0.0
  %61 = vmatprep.subr.mxu0 0.0
  %62 = vmatpush1.msra.mxu0 0.0
  %63 = vmatprep.subr.mxu0 0.0
  %64 = vmatpush1.msra.mxu0 0.0
  %65 = vmatprep.subr.mxu0 0.0
  %66 = vmatpush1.msra.mxu0 0.0
  %67 = vmatprep.subr.mxu0 0.0
  %68 = vmatpush1.msra.mxu0 0.0
  %69 = vmatprep.subr.mxu0 0.0
  %70 = vmatpush1.msra.mxu0 0.0
  %71 = vmatprep.subr.mxu0 0.0
  %72 = vmatpush1.msra.mxu0 0.0
  %73 = vmatprep.subr.mxu0 0.0
  %74 = vmatpush1.msra.mxu0 0.0
  %75 = vmatprep.subr.mxu0 0.0
  %76 = vmatpush1.msra.mxu0 0.0
  %77 = vmatprep.subr.mxu0 0.0
  %78 = vmatpush1.msra.mxu0 0.0
  %79 = vmatprep.subr.mxu0 0.0
  %80 = vmatpush1.msra.mxu0 0.0
  %81 = vmatprep.subr.mxu0 0.0
  %82 = vmatpush1.msra.mxu0 0.0
  %83 = vmatprep.subr.mxu0 0.0
  %84 = vmatpush1.msra.mxu0 0.0
  %85 = vmatprep.subr.mxu0 0.0
  %86 = vmatpush1.msra.mxu0 0.0
  %87 = vmatprep.subr.mxu0 0.0
  %88 = vmatpush1.msra.mxu0 0.0
  %89 = vmatprep.subr.mxu0 0.0
  %90 = vmatpush1.msra.mxu0 0.0
  %91 = vmatprep.subr.mxu0 0.0
  %92 = vmatpush1.msra.mxu0 0.0
  %93 = vmatprep.subr.mxu0 0.0
  %94 = vmatpush1.msra.mxu0 0.0
  %95 = vmatprep.subr.mxu0 0.0
  %96 = vmatpush1.msra.mxu0 0.0
  %97 = vmatprep.subr.mxu0 0.0
  %98 = vmatpush1.msra.mxu0 0.0
  %99 = vmatprep.subr.mxu0 0.0
  %100 = vmatpush1.msra.mxu0 0.0
  %101 = vmatprep.subr.mxu0 0.0
  %102 = vmatpush1.msra.mxu0 0.0
  %103 = vmatprep.subr.mxu0 0.0
  %104 = vmatpush1.msra.mxu0 0.0
  %105 = vmatprep.subr.mxu0 0.0
  %106 = vmatpush1.msra.mxu0 0.0
  %107 = vmatprep.subr.mxu0 0.0
  %108 = vmatpush1.msra.mxu0 0.0
  %109 = vmatprep.subr.mxu0 0.0
  %110 = vmatpush1.msra.mxu0 0.0
  %111 = vmatprep.subr.mxu0 0.0
  %112 = vmatpush1.msra.mxu0 0.0
  %113 = vmatprep.subr.mxu0 0.0
  %114 = vmatpush1.msra.mxu0 0.0
  %115 = vmatprep.subr.mxu0 0.0
  %116 = vmatpush1.msra.mxu0 0.0
  %117 = vmatprep.subr.mxu0 0.0
  %118 = vmatpush1.msra.mxu0 0.0
  %119 = vmatprep.mubr.f32.mxu0 0.0
  %120 = vmatmul.mubr.f32.gmra.mrb[0].mxu0 %v53
  %v121 = vpop.f32.mrb[0].mxu0
  %v122 = vadd.f32 0.0, %v121
  %v123 = vpop.f32.mrb[0].mxu0
  %124 = vdwg.mxu0
  %vm125 = vcmask 31744
  %v127 = vsel %vm125, %v47, 0
  %vm129 = vcmask 1043456
  %v131 = vsel %vm129, %v49, 0
  %133 = vmatprep.subr.mxu0 0.0
  %134 = vmatpush1.msra.mxu0 %v131
  %135 = vmatprep.subr.mxu0 0.0
  %136 = vmatpush1.msra.mxu0 0.0
  %137 = vmatprep.subr.mxu0 0.0
  %138 = vmatpush1.msra.mxu0 0.0
  %139 = vmatprep.subr.mxu0 0.0
  %140 = vmatpush1.msra.mxu0 0.0
  %141 = vmatprep.subr.mxu0 0.0
  %142 = vmatpush1.msra.mxu0 0.0
  %143 = vmatprep.subr.mxu0 0.0
  %144 = vmatpush1.msra.mxu0 0.0
  %145 = vmatprep.subr.mxu0 0.0
  %146 = vmatpush1.msra.mxu0 0.0
  %147 = vmatprep.subr.mxu0 0.0
  %148 = vmatpush1.msra.mxu0 0.0
  %149 = vmatprep.subr.mxu0 0.0
  %150 = vmatpush1.msra.mxu0 0.0
  %151 = vmatprep.subr.mxu0 0.0
  %152 = vmatpush1.msra.mxu0 0.0
  %153 = vmatprep.subr.mxu0 0.0
  %154 = vmatpush1.msra.mxu0 0.0
  %155 = vmatprep.subr.mxu0 0.0
  %156 = vmatpush1.msra.mxu0 0.0
  %157 = vmatprep.subr.mxu0 0.0
  %158 = vmatpush1.msra.mxu0 0.0
  %159 = vmatprep.subr.mxu0 0.0
  %160 = vmatpush1.msra.mxu0 0.0
  %161 = vmatprep.subr.mxu0 0.0
  %162 = vmatpush1.msra.mxu0 0.0
  %163 = vmatprep.subr.mxu0 0.0
  %164 = vmatpush1.msra.mxu0 0.0
  %165 = vmatprep.subr.mxu0 0.0
  %166 = vmatpush1.msra.mxu0 0.0
  %167 = vmatprep.subr.mxu0 0.0
  %168 = vmatpush1.msra.mxu0 0.0
  %169 = vmatprep.subr.mxu0 0.0
  %170 = vmatpush1.msra.mxu0 0.0
  %171 = vmatprep.subr.mxu0 0.0
  %172 = vmatpush1.msra.mxu0 0.0
  %173 = vmatprep.subr.mxu0 0.0
  %174 = vmatpush1.msra.mxu0 0.0
  %175 = vmatprep.subr.mxu0 0.0
  %176 = vmatpush1.msra.mxu0 0.0
  %177 = vmatprep.subr.mxu0 0.0
  %178 = vmatpush1.msra.mxu0 0.0
  %179 = vmatprep.subr.mxu0 0.0
  %180 = vmatpush1.msra.mxu0 0.0
  %181 = vmatprep.subr.mxu0 0.0
  %182 = vmatpush1.msra.mxu0 0.0
  %183 = vmatprep.subr.mxu0 0.0
  %184 = vmatpush1.msra.mxu0 0.0
  %185 = vmatprep.subr.mxu0 0.0
  %186 = vmatpush1.msra.mxu0 0.0
  %187 = vmatprep.subr.mxu0 0.0
  %188 = vmatpush1.msra.mxu0 0.0
  %189 = vmatprep.subr.mxu0 0.0
  %190 = vmatpush1.msra.mxu0 0.0
  %191 = vmatprep.subr.mxu0 0.0
  %192 = vmatpush1.msra.mxu0 0.0
  %193 = vmatprep.subr.mxu0 0.0
  %194 = vmatpush1.msra.mxu0 0.0
  %195 = vmatprep.subr.mxu0 0.0
  %196 = vmatpush1.msra.mxu0 0.0
  %197 = vmatprep.mubr.f32.mxu0 0.0
  %198 = vmatmul.mubr.f32.gmra.mrb[0].mxu0 %v127
  %v199 = vpop.f32.mrb[0].mxu0
  %v200 = vadd.f32 %v122, %v199
  %v201 = vpop.f32.mrb[0].mxu0
  %202 = vdwg.mxu0
  %v203 = vld [vmem:[%s5] sm:$0x1]
  %v205 = vlaneseq
  %v206 = vshrl.u32 %v205, 7
  %v207 = vsub.s32 0, %v206
  %v208 = vrot.slane %v203, %v207
  %v210 = vadd.f32 %v200, %v208
  %v211 = vmax.f32 %v210, 0.0
  %v212 = vld [vmem:[%s6] sm:$0xff]
  %v213 = vld [vmem:[%s6 + $0x8] sm:$0xff]
  %v214 = vld [vmem:[%s6 + $0x10] sm:$0xff]
  %v215 = vld [vmem:[%s6 + $0x18] sm:$0xff]
  %v216 = vld [vmem:[%s7] sm:$0x1]
  %v218 = vlaneseq
  %v219 = vshrl.u32 %v218, 7
  %v220 = vsub.s32 0, %v219
  %v221 = vrot.slane %v216, %v220
  %vm223 = vcmask 261120
  %v225 = vsel %vm223, %v211, 0
  %227 = vmatprep.subr.mxu0 0.0
  %228 = vmatpush1.msra.mxu0 %v212
  %229 = vmatprep.subr.mxu0 0.0
  %230 = vmatpush1.msra.mxu0 %v213
  %231 = vmatprep.subr.mxu0 0.0
  %232 = vmatpush1.msra.mxu0 %v214
  %233 = vmatprep.subr.mxu0 0.0
  %234 = vmatpush1.msra.mxu0 %v215
  %235 = vmatprep.subr.mxu0 0.0
  %236 = vmatpush1.msra.mxu0 0.0
  %237 = vmatprep.subr.mxu0 0.0
  %238 = vmatpush1.msra.mxu0 0.0
  %239 = vmatprep.subr.mxu0 0.0
  %240 = vmatpush1.msra.mxu0 0.0
  %241 = vmatprep.subr.mxu0 0.0
  %242 = vmatpush1.msra.mxu0 0.0
  %243 = vmatprep.subr.mxu0 0.0
  %244 = vmatpush1.msra.mxu0 0.0
  %245 = vmatprep.subr.mxu0 0.0
  %246 = vmatpush1.msra.mxu0 0.0
  %247 = vmatprep.subr.mxu0 0.0
  %248 = vmatpush1.msra.mxu0 0.0
  %249 = vmatprep.subr.mxu0 0.0
  %250 = vmatpush1.msra.mxu0 0.0
  %251 = vmatprep.subr.mxu0 0.0
  %252 = vmatpush1.msra.mxu0 0.0
  %253 = vmatprep.subr.mxu0 0.0
  %254 = vmatpush1.msra.mxu0 0.0
  %255 = vmatprep.subr.mxu0 0.0
  %256 = vmatpush1.msra.mxu0 0.0
  %257 = vmatprep.subr.mxu0 0.0
  %258 = vmatpush1.msra.mxu0 0.0
  %259 = vmatprep.subr.mxu0 0.0
  %260 = vmatpush1.msra.mxu0 0.0
  %261 = vmatprep.subr.mxu0 0.0
  %262 = vmatpush1.msra.mxu0 0.0
  %263 = vmatprep.subr.mxu0 0.0
  %264 = vmatpush1.msra.mxu0 0.0
  %265 = vmatprep.subr.mxu0 0.0
  %266 = vmatpush1.msra.mxu0 0.0
  %267 = vmatprep.subr.mxu0 0.0
  %268 = vmatpush1.msra.mxu0 0.0
  %269 = vmatprep.subr.mxu0 0.0
  %270 = vmatpush1.msra.mxu0 0.0
  %271 = vmatprep.subr.mxu0 0.0
  %272 = vmatpush1.msra.mxu0 0.0
  %273 = vmatprep.subr.mxu0 0.0
  %274 = vmatpush1.msra.mxu0 0.0
  %275 = vmatprep.subr.mxu0 0.0
  %276 = vmatpush1.msra.mxu0 0.0
  %277 = vmatprep.subr.mxu0 0.0
  %278 = vmatpush1.msra.mxu0 0.0
  %279 = vmatprep.subr.mxu0 0.0
  %280 = vmatpush1.msra.mxu0 0.0
  %281 = vmatprep.subr.mxu0 0.0
  %282 = vmatpush1.msra.mxu0 0.0
  %283 = vmatprep.subr.mxu0 0.0
  %284 = vmatpush1.msra.mxu0 0.0
  %285 = vmatprep.subr.mxu0 0.0
  %286 = vmatpush1.msra.mxu0 0.0
  %287 = vmatprep.subr.mxu0 0.0
  %288 = vmatpush1.msra.mxu0 0.0
  %289 = vmatprep.subr.mxu0 0.0
  %290 = vmatpush1.msra.mxu0 0.0
  %291 = vmatprep.mubr.f32.mxu0 0.0
  %292 = vmatmul.mubr.f32.gmra.mrb[0].mxu0 %v225
  %v293 = vpop.f32.mrb[0].mxu0
  %v294 = vadd.f32 %v221, %v293
  %v295 = vpop.f32.mrb[0].mxu0
  %296 = vdwg.mxu0
  %v297 = vmax.f32 %v294, 0.0
  %v298 = vld [vmem:[%s8] sm:$0xff]
  %v299 = vld [vmem:[%s8 + $0x8] sm:$0xff]
  %v300 = vld [vmem:[%s8 + $0x10] sm:$0xff]
  %v301 = vld [vmem:[%s8 + $0x18] sm:$0xff]
  %v302 = vld [vmem:[%s9] sm:$0x1]
  %v304 = vlaneseq
  %v305 = vshrl.u32 %v304, 7
  %v306 = vsub.s32 0, %v305
  %v307 = vrot.slane %v302, %v306
  %v310 = vsel %vm223, %v297, 0
  %312 = vmatprep.subr.mxu0 0.0
  %313 = vmatpush1.msra.mxu0 %v298
  %314 = vmatprep.subr.mxu0 0.0
  %315 = vmatpush1.msra.mxu0 %v299
  %316 = vmatprep.subr.mxu0 0.0
  %317 = vmatpush1.msra.mxu0 %v300
  %318 = vmatprep.subr.mxu0 0.0
  %319 = vmatpush1.msra.mxu0 %v301
  %320 = vmatprep.subr.mxu0 0.0
  %321 = vmatpush1.msra.mxu0 0.0
  %322 = vmatprep.subr.mxu0 0.0
  %323 = vmatpush1.msra.mxu0 0.0
  %324 = vmatprep.subr.mxu0 0.0
  %325 = vmatpush1.msra.mxu0 0.0
  %326 = vmatprep.subr.mxu0 0.0
  %327 = vmatpush1.msra.mxu0 0.0
  %328 = vmatprep.subr.mxu0 0.0
  %329 = vmatpush1.msra.mxu0 0.0
  %330 = vmatprep.subr.mxu0 0.0
  %331 = vmatpush1.msra.mxu0 0.0
  %332 = vmatprep.subr.mxu0 0.0
  %333 = vmatpush1.msra.mxu0 0.0
  %334 = vmatprep.subr.mxu0 0.0
  %335 = vmatpush1.msra.mxu0 0.0
  %336 = vmatprep.subr.mxu0 0.0
  %337 = vmatpush1.msra.mxu0 0.0
  %338 = vmatprep.subr.mxu0 0.0
  %339 = vmatpush1.msra.mxu0 0.0
  %340 = vmatprep.subr.mxu0 0.0
  %341 = vmatpush1.msra.mxu0 0.0
  %342 = vmatprep.subr.mxu0 0.0
  %343 = vmatpush1.msra.mxu0 0.0
  %344 = vmatprep.subr.mxu0 0.0
  %345 = vmatpush1.msra.mxu0 0.0
  %346 = vmatprep.subr.mxu0 0.0
  %347 = vmatpush1.msra.mxu0 0.0
  %348 = vmatprep.subr.mxu0 0.0
  %349 = vmatpush1.msra.mxu0 0.0
  %350 = vmatprep.subr.mxu0 0.0
  %351 = vmatpush1.msra.mxu0 0.0
  %352 = vmatprep.subr.mxu0 0.0
  %353 = vmatpush1.msra.mxu0 0.0
  %354 = vmatprep.subr.mxu0 0.0
  %355 = vmatpush1.msra.mxu0 0.0
  %356 = vmatprep.subr.mxu0 0.0
  %357 = vmatpush1.msra.mxu0 0.0
  %358 = vmatprep.subr.mxu0 0.0
  %359 = vmatpush1.msra.mxu0 0.0
  %360 = vmatprep.subr.mxu0 0.0
  %361 = vmatpush1.msra.mxu0 0.0
  %362 = vmatprep.subr.mxu0 0.0
  %363 = vmatpush1.msra.mxu0 0.0
  %364 = vmatprep.subr.mxu0 0.0
  %365 = vmatpush1.msra.mxu0 0.0
  %366 = vmatprep.subr.mxu0 0.0
  %367 = vmatpush1.msra.mxu0 0.0
  %368 = vmatprep.subr.mxu0 0.0
  %369 = vmatpush1.msra.mxu0 0.0
  %370 = vmatprep.subr.mxu0 0.0
  %371 = vmatpush1.msra.mxu0 0.0
  %372 = vmatprep.subr.mxu0 0.0
  %373 = vmatpush1.msra.mxu0 0.0
  %374 = vmatprep.subr.mxu0 0.0
  %375 = vmatpush1.msra.mxu0 0.0
  %376 = vmatprep.mubr.f32.mxu0 0.0
  %377 = vmatmul.mubr.f32.gmra.mrb[0].mxu0 %v310
  %v378 = vpop.f32.mrb[0].mxu0
  %v379 = vadd.f32 %v307, %v378
  %v380 = vpop.f32.mrb[0].mxu0
  %381 = vdwg.mxu0
  %v382 = vld [vmem:[%s10] sm:$0xff]
  %v383 = vld [vmem:[%s10 + $0x8] sm:$0xff]
  %v384 = vld [vmem:[%s10 + $0x10] sm:$0xff]
  %v385 = vld [vmem:[%s10 + $0x18] sm:$0xff]
  %v386 = vld [vmem:[%s11] sm:$0x1]
  %v388 = vlaneseq
  %v389 = vshrl.u32 %v388, 7
  %v390 = vsub.s32 0, %v389
  %v391 = vrot.slane %v386, %v390
  %393 = vmatprep.subr.mxu0 0.0
  %394 = vmatpush1.msra.mxu0 %v382
  %395 = vmatprep.subr.mxu0 0.0
  %396 = vmatpush1.msra.mxu0 %v383
  %397 = vmatprep.subr.mxu0 0.0
  %398 = vmatpush1.msra.mxu0 %v384
  %399 = vmatprep.subr.mxu0 0.0
  %400 = vmatpush1.msra.mxu0 %v385
  %401 = vmatprep.subr.mxu0 0.0
  %402 = vmatpush1.msra.mxu0 0.0
  %403 = vmatprep.subr.mxu0 0.0
  %404 = vmatpush1.msra.mxu0 0.0
  %405 = vmatprep.subr.mxu0 0.0
  %406 = vmatpush1.msra.mxu0 0.0
  %407 = vmatprep.subr.mxu0 0.0
  %408 = vmatpush1.msra.mxu0 0.0
  %409 = vmatprep.subr.mxu0 0.0
  %410 = vmatpush1.msra.mxu0 0.0
  %411 = vmatprep.subr.mxu0 0.0
  %412 = vmatpush1.msra.mxu0 0.0
  %413 = vmatprep.subr.mxu0 0.0
  %414 = vmatpush1.msra.mxu0 0.0
  %415 = vmatprep.subr.mxu0 0.0
  %416 = vmatpush1.msra.mxu0 0.0
  %417 = vmatprep.subr.mxu0 0.0
  %418 = vmatpush1.msra.mxu0 0.0
  %419 = vmatprep.subr.mxu0 0.0
  %420 = vmatpush1.msra.mxu0 0.0
  %421 = vmatprep.subr.mxu0 0.0
  %422 = vmatpush1.msra.mxu0 0.0
  %423 = vmatprep.subr.mxu0 0.0
  %424 = vmatpush1.msra.mxu0 0.0
  %425 = vmatprep.subr.mxu0 0.0
  %426 = vmatpush1.msra.mxu0 0.0
  %427 = vmatprep.subr.mxu0 0.0
  %428 = vmatpush1.msra.mxu0 0.0
  %429 = vmatprep.subr.mxu0 0.0
  %430 = vmatpush1.msra.mxu0 0.0
  %431 = vmatprep.subr.mxu0 0.0
  %432 = vmatpush1.msra.mxu0 0.0
  %433 = vmatprep.subr.mxu0 0.0
  %434 = vmatpush1.msra.mxu0 0.0
  %435 = vmatprep.subr.mxu0 0.0
  %436 = vmatpush1.msra.mxu0 0.0
  %437 = vmatprep.subr.mxu0 0.0
  %438 = vmatpush1.msra.mxu0 0.0
  %439 = vmatprep.subr.mxu0 0.0
  %440 = vmatpush1.msra.mxu0 0.0
  %441 = vmatprep.subr.mxu0 0.0
  %442 = vmatpush1.msra.mxu0 0.0
  %443 = vmatprep.subr.mxu0 0.0
  %444 = vmatpush1.msra.mxu0 0.0
  %445 = vmatprep.subr.mxu0 0.0
  %446 = vmatpush1.msra.mxu0 0.0
  %447 = vmatprep.subr.mxu0 0.0
  %448 = vmatpush1.msra.mxu0 0.0
  %449 = vmatprep.subr.mxu0 0.0
  %450 = vmatpush1.msra.mxu0 0.0
  %451 = vmatprep.subr.mxu0 0.0
  %452 = vmatpush1.msra.mxu0 0.0
  %453 = vmatprep.subr.mxu0 0.0
  %454 = vmatpush1.msra.mxu0 0.0
  %455 = vmatprep.subr.mxu0 0.0
  %456 = vmatpush1.msra.mxu0 0.0
  %457 = vmatprep.mubr.f32.mxu0 0.0
  %458 = vmatmul.mubr.f32.gmra.mrb[0].mxu0 %v310
  %v459 = vpop.f32.mrb[0].mxu0
  %v460 = vadd.f32 %v391, %v459
  %v461 = vpop.f32.mrb[0].mxu0
  %462 = vdwg.mxu0
  %v463 = vtanh.pop %v379
  %s464 = sld [smem:[#allocation2]]
  %v465 = vstv %s464
  %v466 = vmul.f32 %v463, %v465
  %v467 = vmul.f32 %v466, 1.442695
  %v468 = vpow.pop %v467
  %v469 = vld [vmem:[%s1] sm:$0xff]
  %v470 = vmul.f32 %v469, %v468
  %v471 = vadd.f32 %v470, %v460
  %472 = vst.msk [vmem:[%s13] sm:$0xff] %vm125, %v471
  %v473 = vsel %vm125, %v466, 0.0
  %474 = vadd.xlane.f32.xlu0 %v473
  %v475 = vpop.xlane.xlu0 %474
  %vm476 = vcmask 7168
  %477 = vst.msk [vmem:[%s14] sm:$0xff] %vm476, %v475
  // Predicated region
  $region54: #{tpu_custom_call.1} parent=0 // pred_check
    _
  $region55: #{tpu_custom_call.1} parent=0 // pred_check_branch
    %479 = sbr.rel (0) target = $region57
  $region56: #{tpu_custom_call.1} parent=0 // pred_region
    _
  $region57: #{tpu_custom_call.1} parent=0 // pred_fallthru
    _
  // Predicated region
  $region58: #{tpu_custom_call.1} parent=0 // pred_check
    _
  $region59: #{tpu_custom_call.1} parent=0 // pred_check_branch
    %481 = sbr.rel (0) target = $region61
  $region60: #{tpu_custom_call.1} parent=0 // pred_region
    _
  $region61: #{tpu_custom_call.1} parent=0 // pred_fallthru
    _
  // Predicated region
  $region62: #{tpu_custom_call.1} parent=0 // pred_check
    _
  $region63: #{tpu_custom_call.1} parent=0 // pred_check_branch
    %483 = sbr.rel (0) target = $region65
  $region64: #{tpu_custom_call.1} parent=0 // pred_region
    _
  $region65: #{tpu_custom_call.1} parent=0 // pred_fallthru
    _
  // Predicated region
  $region66: #{tpu_custom_call.1} parent=0 // pred_check
    _
  $region67: #{tpu_custom_call.1} parent=0 // pred_check_branch
    %485 = sbr.rel (0) target = $region69
  $region68: #{tpu_custom_call.1} parent=0 // pred_region
    _
  $region69: #{tpu_custom_call.1} parent=0 // pred_fallthru
    _

</llo_original>
